<compile_context>
chip_gen: v7x
topology: tpu7x:2x2x1
jax: 0.10.0
libtpu: 0.0.40
codegen_flags: <defaults>
</compile_context>

<pallas_src>
import jax
import jax.numpy as jnp
from jax import lax
from jax.experimental import pallas as pl
from jax.experimental.pallas import tpu as pltpu


def m2r_kernel(mi_ref, mj_ref, wt_ref, r_ref, idx_ref, out_ref):
    # A = W^T @ r  -> (n_v, n_r).  W arrives already transposed (n_v, k),
    # so this is a plain MXU contraction with no XLU transpose.
    A = jnp.dot(wt_ref[...], r_ref[...], preferred_element_type=jnp.float32)

    # Fuse the two batch matmuls: stack Mj over Mi along the sublane axis and
    # issue ONE MXU call producing (2B, n_r).
    m_cat = jnp.concatenate([mj_ref[...], mi_ref[...]], axis=0)        # (2B, n_v)
    T = jnp.dot(m_cat, A, preferred_element_type=jnp.float32)          # (2B, n_r)

    B = mi_ref.shape[0]
    n_r = r_ref.shape[1]
    t_j = T[:B, :]                                                     # (B, n_r)
    t_i = T[B:, :]                                                     # (B, n_r)

    # idx_ref is (B, 2) int32 with columns [ri, rp]; gather the relation
    # column per row via one-hot select (VPU compare + multiply + row-sum).
    ri = idx_ref[:, 0:1]                                               # (B, 1)
    rp = idx_ref[:, 1:2]                                               # (B, 1)
    iota_r = lax.broadcasted_iota(jnp.int32, (B, n_r), 1)
    onehot_p = (iota_r == rp).astype(jnp.float32)                      # (B, n_r)
    onehot_i = (iota_r == ri).astype(jnp.float32)                      # (B, n_r)

    margin = jnp.sum(t_j * onehot_p - t_i * onehot_i,
                     axis=-1, keepdims=True) + 1.0                     # (B, 1)
    loss = jnp.maximum(margin, 0.0)                                    # relu

    # mean = sum * (1/B); 1/B is a compile-time constant.
    out_ref[0, 0] = jnp.sum(loss) * (1.0 / B)


def _as_f32(x):
    x = jnp.asarray(x)
    return x if x.dtype == jnp.float32 else x.astype(jnp.float32)


def m2r_forward(W, r, Mi, Mj, ri, rp):
    """Pallas implementation of M2R.forward. Returns a scalar float32."""
    B, n_v = Mi.shape
    del n_v  # shapes are carried by the arrays themselves

    # Pack the two index vectors into one (B, 2) int32 array -> single DMA.
    idx = jnp.stack([jnp.asarray(ri), jnp.asarray(rp)], axis=1)
    if idx.dtype != jnp.int32:
        idx = idx.astype(jnp.int32)

    # Transpose W once in the wrapper (parameter; in production store it
    # transposed so this is a true one-time cost).
    W_t = _as_f32(W).T                                                 # (n_v, k)

    out = pl.pallas_call(
        m2r_kernel,
        out_shape=jax.ShapeDtypeStruct((1, 1), jnp.float32),
        in_specs=[
            pl.BlockSpec(memory_space=pltpu.MemorySpace.VMEM),  # Mi   (B, n_v)
            pl.BlockSpec(memory_space=pltpu.MemorySpace.VMEM),  # Mj   (B, n_v)
            pl.BlockSpec(memory_space=pltpu.MemorySpace.VMEM),  # W^T  (n_v, k)
            pl.BlockSpec(memory_space=pltpu.MemorySpace.VMEM),  # r    (k, n_r)
            pl.BlockSpec(memory_space=pltpu.MemorySpace.VMEM),  # idx  (B, 2)
        ],
        out_specs=pl.BlockSpec(memory_space=pltpu.MemorySpace.SMEM),
    )(
        _as_f32(Mi),
        _as_f32(Mj),
        W_t,
        _as_f32(r),
        idx,
    )
    return out[0, 0]


def m2r_reference(W, r, Mi, Mj, ri, rp):
    """Pure-JAX reference mirroring the PyTorch forward exactly."""
    loss = jnp.diag((W @ Mj.T).T @ r[:, rp])
    loss = loss - jnp.diag((W @ Mi.T).T @ r[:, ri])
    loss = loss + 1.0
    return jnp.mean(jax.nn.relu(loss))


if __name__ == "__main__":
    # Small deterministic setup consistent with M2R(n_v, n_r, k).
    B, n_v, n_r, k = 8, 32, 16, 50

    key = jax.random.PRNGKey(0)
    kW, kr, kMi, kMj, kri, krp = jax.random.split(key, 6)

    # Parameters: normal(mean=0, std=1/k), matching the PyTorch __init__.
    W = (1.0 / k) * jax.random.normal(kW, (k, n_v), dtype=jnp.float32)
    r = (1.0 / k) * jax.random.normal(kr, (k, n_r), dtype=jnp.float32)

    # Inputs.
    Mi = jax.random.normal(kMi, (B, n_v), dtype=jnp.float32)
    Mj = jax.random.normal(kMj, (B, n_v), dtype=jnp.float32)
    ri = jax.random.randint(kri, (B,), 0, n_r, dtype=jnp.int32)
    rp = jax.random.randint(krp, (B,), 0, n_r, dtype=jnp.int32)

    out = jax.block_until_ready(m2r_forward(W, r, Mi, Mj, ri, rp))
    ref = jax.block_until_ready(m2r_reference(W, r, Mi, Mj, ri, rp))

    assert jnp.allclose(out, ref, atol=1e-5, rtol=1e-5), (out, ref)

    print("KERNEL_OK")
</pallas_src>

<mosaic_0001>
module attributes {stable_mosaic.version = 11 : i64} {
  func.func @m2r_kernel(%arg0: memref<8x32xf32, #tpu.memory_space<vmem>>, %arg1: memref<8x32xf32, #tpu.memory_space<vmem>>, %arg2: memref<32x50xf32, #tpu.memory_space<vmem>>, %arg3: memref<50x16xf32, #tpu.memory_space<vmem>>, %arg4: memref<8x2xi32, #tpu.memory_space<vmem>>, %arg5: memref<1x1xf32, #tpu.memory_space<smem>>) attributes {dimension_semantics = [], scalar_prefetch = 0 : i64, scratch_operands = 0 : i64, tpu.core_type = #tpu.core_type<tc>} {
    %c0 = arith.constant 0 : index
    %c0_0 = arith.constant 0 : index
    %0 = vector.load %arg2[%c0, %c0_0] : memref<32x50xf32, #tpu.memory_space<vmem>>, vector<32x50xf32>
    %c0_1 = arith.constant 0 : index
    %c0_2 = arith.constant 0 : index
    %1 = vector.load %arg3[%c0_1, %c0_2] : memref<50x16xf32, #tpu.memory_space<vmem>>, vector<50x16xf32>
    %cst = arith.constant dense<0.000000e+00> : vector<32x16xf32>
    %2 = tpu.matmul %0, %1, %cst {dimension_numbers = #tpu.dot_dimension_numbers<[1], [0], [0], [1], [0, 0, 1, 1], [], []>} : vector<32x50xf32>, vector<50x16xf32>, vector<32x16xf32> -> vector<32x16xf32>
    %c0_3 = arith.constant 0 : index
    %c0_4 = arith.constant 0 : index
    %3 = vector.load %arg1[%c0_3, %c0_4] : memref<8x32xf32, #tpu.memory_space<vmem>>, vector<8x32xf32>
    %c0_5 = arith.constant 0 : index
    %c0_6 = arith.constant 0 : index
    %4 = vector.load %arg0[%c0_5, %c0_6] : memref<8x32xf32, #tpu.memory_space<vmem>>, vector<8x32xf32>
    %5 = tpu.concatenate %3, %4 in 0 : vector<8x32xf32>, vector<8x32xf32> -> vector<16x32xf32>
    %cst_7 = arith.constant dense<0.000000e+00> : vector<16x16xf32>
    %6 = tpu.matmul %5, %2, %cst_7 {dimension_numbers = #tpu.dot_dimension_numbers<[1], [0], [0], [1], [0, 0, 1, 1], [], []>} : vector<16x32xf32>, vector<32x16xf32>, vector<16x16xf32> -> vector<16x16xf32>
    %7 = vector.extract_strided_slice %6 {offsets = [0, 0], sizes = [8, 16], strides = [1, 1]} : vector<16x16xf32> to vector<8x16xf32>
    %8 = vector.extract_strided_slice %6 {offsets = [8, 0], sizes = [8, 16], strides = [1, 1]} : vector<16x16xf32> to vector<8x16xf32>
    %c0_8 = arith.constant 0 : index
    %c0_9 = arith.constant 0 : index
    %9 = vector.load %arg4[%c0_8, %c0_9] : memref<8x2xi32, #tpu.memory_space<vmem>>, vector<8x1xi32>
    %c0_10 = arith.constant 0 : index
    %c1 = arith.constant 1 : index
    %10 = vector.load %arg4[%c0_10, %c1] : memref<8x2xi32, #tpu.memory_space<vmem>>, vector<8x1xi32>
    %11 = tpu.iota {dimensions = array<i32: 1>} : vector<8x16xi32>
    %12 = vector.broadcast %10 : vector<8x1xi32> to vector<8x16xi32>
    %13 = arith.cmpi eq, %11, %12 : vector<8x16xi32>
    %14 = arith.extui %13 : vector<8x16xi1> to vector<8x16xi32>
    %15 = arith.sitofp %14 : vector<8x16xi32> to vector<8x16xf32>
    %16 = vector.broadcast %9 : vector<8x1xi32> to vector<8x16xi32>
    %17 = arith.cmpi eq, %11, %16 : vector<8x16xi32>
    %18 = arith.extui %17 : vector<8x16xi1> to vector<8x16xi32>
    %19 = arith.sitofp %18 : vector<8x16xi32> to vector<8x16xf32>
    %20 = arith.mulf %7, %15 : vector<8x16xf32>
    %21 = arith.mulf %8, %19 : vector<8x16xf32>
    %22 = arith.subf %20, %21 : vector<8x16xf32>
    %cst_11 = arith.constant dense<0.000000e+00> : vector<8xf32>
    %23 = vector.multi_reduction <add>, %22, %cst_11 [1] : vector<8x16xf32> to vector<8xf32>
    %24 = vector.shape_cast %23 : vector<8xf32> to vector<8x1xf32>
    %cst_12 = arith.constant 1.000000e+00 : f32
    %25 = vector.broadcast %cst_12 : f32 to vector<8x1xf32>
    %26 = arith.addf %24, %25 : vector<8x1xf32>
    %cst_13 = arith.constant 0.000000e+00 : f32
    %27 = vector.broadcast %cst_13 : f32 to vector<8x1xf32>
    %28 = arith.maximumf %26, %27 : vector<8x1xf32>
    %29 = vector.shape_cast %28 : vector<8x1xf32> to vector<1x8x1xf32>
    %cst_14 = arith.constant dense<0.000000e+00> : vector<1xf32>
    %30 = vector.multi_reduction <add>, %29, %cst_14 [1, 2] : vector<1x8x1xf32> to vector<1xf32>
    %31 = vector.shape_cast %30 : vector<1xf32> to vector<1x1x1xf32>
    %32 = vector.extract %31[0, 0, 0] : f32 from vector<1x1x1xf32>
    %cst_15 = arith.constant 1.250000e-01 : f32
    %33 = arith.mulf %32, %cst_15 : f32
    %c0_16 = arith.constant 0 : index
    %c0_17 = arith.constant 0 : index
    %34 = memref.load %arg5[%c0_16, %c0_17] : memref<1x1xf32, #tpu.memory_space<smem>>
    memref.store %33, %arg5[%c0_16, %c0_17] : memref<1x1xf32, #tpu.memory_space<smem>>
    return
  }
}

</mosaic_0001>

<llo_original>
// kernel: tpu_custom_call.1
$region0: #{tpu_custom_call.1}
  #allocation0 [shape = 'u32[]', space=smem, size = 0x4, offset = 0x4, fixed_abs, tag = 'smem constant byte address 0x4 - core index']
  #allocation1 [shape = 'u32[144,128]{1,0:T(1,128)}', space=vmem, size = 0x12000, scoped, tag = 'internal scratch']
  %s0 = inlined_call_operand.vmem [shape: f32[8,32], index: 0, kind: input, shape index: {}]
  %s1 = inlined_call_operand.vmem [shape: f32[8,32], index: 1, kind: input, shape index: {}]
  %s2 = inlined_call_operand.vmem [shape: f32[32,50], index: 2, kind: input, shape index: {}]
  %s3 = inlined_call_operand.vmem [shape: f32[50,16], index: 3, kind: input, shape index: {}]
  %s4 = inlined_call_operand.vmem [shape: s32[8,2], index: 4, kind: input, shape index: {}]
  %s5 = inlined_call_operand.hbm [shape: f32[1,1], index: 5, kind: output, shape index: {}]
  %s6 = sld [smem:[#allocation0]]
  $region30: #{tpu_custom_call.1} parent=0
    _
  %s8 = ssub.s32 1, %s6
  %s9 = scalar_select 0, %s8, %s6
  $region1: #{tpu_custom_call.1} parent=0
    #allocation2 [shape = 'u8[512]{0}', space=smem, size = 0x200, scoped, tag = 'output window, operand 0, single buffered']
    #allocation3 [shape = 's32[1]{0}', space=sflag, size = 0x4, scoped, tag = 'scoped memory for tpu_custom_call.1']
    %10 = vsyncpa [#allocation3], 0
    // Predicated region
    $region2: #{tpu_custom_call.1} parent=1 // pred_check
      _
    $region3: #{tpu_custom_call.1} parent=1 // pred_check_branch
      %12 = sbr.rel (0) target = $region5
    $region4: #{tpu_custom_call.1} parent=1 // pred_region
      _
    $region5: #{tpu_custom_call.1} parent=1 // pred_fallthru
      _
    // Predicated region
    $region6: #{tpu_custom_call.1} parent=1 // pred_check
      _
    $region7: #{tpu_custom_call.1} parent=1 // pred_check_branch
      %14 = sbr.rel (0) target = $region9
    $region8: #{tpu_custom_call.1} parent=1 // pred_region
      _
    $region9: #{tpu_custom_call.1} parent=1 // pred_fallthru
      _
    // Predicated region
    $region10: #{tpu_custom_call.1} parent=1 // pred_check
      _
    $region11: #{tpu_custom_call.1} parent=1 // pred_check_branch
      %16 = sbr.rel (0) target = $region13
    $region12: #{tpu_custom_call.1} parent=1 // pred_region
      _
    $region13: #{tpu_custom_call.1} parent=1 // pred_fallthru
      _
    // Predicated region
    $region14: #{tpu_custom_call.1} parent=1 // pred_check
      _
    $region15: #{tpu_custom_call.1} parent=1 // pred_check_branch
      %18 = sbr.rel (0) target = $region17
    $region16: #{tpu_custom_call.1} parent=1 // pred_region
      _
    $region17: #{tpu_custom_call.1} parent=1 // pred_fallthru
      _
    // Predicated region
    $region18: #{tpu_custom_call.1} parent=1 // pred_check
      _
    $region19: #{tpu_custom_call.1} parent=1 // pred_check_branch
      %20 = sbr.rel (0) target = $region21
    $region20: #{tpu_custom_call.1} parent=1 // pred_region
      _
    $region21: #{tpu_custom_call.1} parent=1 // pred_fallthru
      _
    %v21 = vld [vmem:[%s2] sm:$0xff]
    %v22 = vld [vmem:[%s2 + $0x8] sm:$0xff]
    %v23 = vld [vmem:[%s2 + $0x10] sm:$0xff]
    %v24 = vld [vmem:[%s2 + $0x18] sm:$0xff]
    %v25 = vld [vmem:[%s3] sm:$0xff]
    %v26 = vld [vmem:[%s3 + $0x8] sm:$0xff]
    %v27 = vld [vmem:[%s3 + $0x10] sm:$0xff]
    %v28 = vld [vmem:[%s3 + $0x18] sm:$0xff]
    %v29 = vld [vmem:[%s3 + $0x20] sm:$0xff]
    %v30 = vld [vmem:[%s3 + $0x28] sm:$0xff]
    %v31 = vld [vmem:[%s3 + $0x30] sm:$0x3]
    %vm32 = vcmask 408576
    %v34 = vsel %vm32, %v21, 0
    %v37 = vsel %vm32, %v22, 0
    %v40 = vsel %vm32, %v23, 0
    %v43 = vsel %vm32, %v24, 0
    %vm45 = vcmask 1041408
    %v47 = vsel %vm45, %v31, 0
    %49 = vmatprep.subr.mxu0 0.0
    %50 = vmatpush1.msra.mxu0 %v25
    %51 = vmatprep.subr.mxu0 0.0
    %52 = vmatpush1.msra.mxu0 %v26
    %53 = vmatprep.subr.mxu0 0.0
    %54 = vmatpush1.msra.mxu0 %v27
    %55 = vmatprep.subr.mxu0 0.0
    %56 = vmatpush1.msra.mxu0 %v28
    %57 = vmatprep.subr.mxu0 0.0
    %58 = vmatpush1.msra.mxu0 %v29
    %59 = vmatprep.subr.mxu0 0.0
    %60 = vmatpush1.msra.mxu0 %v30
    %61 = vmatprep.subr.mxu0 0.0
    %62 = vmatpush1.msra.mxu0 %v47
    %63 = vmatprep.subr.mxu0 0.0
    %64 = vmatpush1.msra.mxu0 0.0
    %65 = vmatprep.subr.mxu0 0.0
    %66 = vmatpush1.msra.mxu0 0.0
    %67 = vmatprep.subr.mxu0 0.0
    %68 = vmatpush1.msra.mxu0 0.0
    %69 = vmatprep.subr.mxu0 0.0
    %70 = vmatpush1.msra.mxu0 0.0
    %71 = vmatprep.subr.mxu0 0.0
    %72 = vmatpush1.msra.mxu0 0.0
    %73 = vmatprep.subr.mxu0 0.0
    %74 = vmatpush1.msra.mxu0 0.0
    %75 = vmatprep.subr.mxu0 0.0
    %76 = vmatpush1.msra.mxu0 0.0
    %77 = vmatprep.subr.mxu0 0.0
    %78 = vmatpush1.msra.mxu0 0.0
    %79 = vmatprep.subr.mxu0 0.0
    %80 = vmatpush1.msra.mxu0 0.0
    %81 = vmatprep.subr.mxu0 0.0
    %82 = vmatpush1.msra.mxu0 0.0
    %83 = vmatprep.subr.mxu0 0.0
    %84 = vmatpush1.msra.mxu0 0.0
    %85 = vmatprep.subr.mxu0 0.0
    %86 = vmatpush1.msra.mxu0 0.0
    %87 = vmatprep.subr.mxu0 0.0
    %88 = vmatpush1.msra.mxu0 0.0
    %89 = vmatprep.subr.mxu0 0.0
    %90 = vmatpush1.msra.mxu0 0.0
    %91 = vmatprep.subr.mxu0 0.0
    %92 = vmatpush1.msra.mxu0 0.0
    %93 = vmatprep.subr.mxu0 0.0
    %94 = vmatpush1.msra.mxu0 0.0
    %95 = vmatprep.subr.mxu0 0.0
    %96 = vmatpush1.msra.mxu0 0.0
    %97 = vmatprep.subr.mxu0 0.0
    %98 = vmatpush1.msra.mxu0 0.0
    %99 = vmatprep.subr.mxu0 0.0
    %100 = vmatpush1.msra.mxu0 0.0
    %101 = vmatprep.subr.mxu0 0.0
    %102 = vmatpush1.msra.mxu0 0.0
    %103 = vmatprep.subr.mxu0 0.0
    %104 = vmatpush1.msra.mxu0 0.0
    %105 = vmatprep.subr.mxu0 0.0
    %106 = vmatpush1.msra.mxu0 0.0
    %107 = vmatprep.subr.mxu0 0.0
    %108 = vmatpush1.msra.mxu0 0.0
    %109 = vmatprep.subr.mxu0 0.0
    %110 = vmatpush1.msra.mxu0 0.0
    %111 = vmatprep.subr.mxu0 0.0
    %112 = vmatpush1.msra.mxu0 0.0
    %113 = vmatprep.mubr.f32.mxu0 0.0
    %114 = vmatmul.mubr.f32.gmra.mrb[0].mxu0 %v34
    %v115 = vpop.f32.mrb[0].mxu0
    %v116 = vadd.f32 0.0, %v115
    %v117 = vpop.f32.mrb[0].mxu0
    %118 = vmatprep.mubr.f32.mxu0 0.0
    %119 = vmatmul.mubr.f32.gmra.mrb[0].mxu0 %v37
    %v120 = vpop.f32.mrb[0].mxu0
    %v121 = vadd.f32 0.0, %v120
    %v122 = vpop.f32.mrb[0].mxu0
    %123 = vmatprep.mubr.f32.mxu0 0.0
    %124 = vmatmul.mubr.f32.gmra.mrb[0].mxu0 %v40
    %v125 = vpop.f32.mrb[0].mxu0
    %v126 = vadd.f32 0.0, %v125
    %v127 = vpop.f32.mrb[0].mxu0
    %128 = vmatprep.mubr.f32.mxu0 0.0
    %129 = vmatmul.mubr.f32.gmra.mrb[0].mxu0 %v43
    %v130 = vpop.f32.mrb[0].mxu0
    %v131 = vadd.f32 0.0, %v130
    %v132 = vpop.f32.mrb[0].mxu0
    %133 = vdwg.mxu0
    %v134 = vld [vmem:[%s1] sm:$0xff]
    %v135 = vld [vmem:[%s0] sm:$0xff]
    %vm136 = vcmask 261120
    %v138 = vsel %vm136, %v134, 0
    %v141 = vsel %vm136, %v135, 0
    %143 = vmatprep.subr.mxu0 0.0
    %144 = vmatpush1.msra.mxu0 %v116
    %145 = vmatprep.subr.mxu0 0.0
    %146 = vmatpush1.msra.mxu0 %v121
    %147 = vmatprep.subr.mxu0 0.0
    %148 = vmatpush1.msra.mxu0 %v126
    %149 = vmatprep.subr.mxu0 0.0
    %150 = vmatpush1.msra.mxu0 %v131
    %151 = vmatprep.subr.mxu0 0.0
    %152 = vmatpush1.msra.mxu0 0.0
    %153 = vmatprep.subr.mxu0 0.0
    %154 = vmatpush1.msra.mxu0 0.0
    %155 = vmatprep.subr.mxu0 0.0
    %156 = vmatpush1.msra.mxu0 0.0
    %157 = vmatprep.subr.mxu0 0.0
    %158 = vmatpush1.msra.mxu0 0.0
    %159 = vmatprep.subr.mxu0 0.0
    %160 = vmatpush1.msra.mxu0 0.0
    %161 = vmatprep.subr.mxu0 0.0
    %162 = vmatpush1.msra.mxu0 0.0
    %163 = vmatprep.subr.mxu0 0.0
    %164 = vmatpush1.msra.mxu0 0.0
    %165 = vmatprep.subr.mxu0 0.0
    %166 = vmatpush1.msra.mxu0 0.0
    %167 = vmatprep.subr.mxu0 0.0
    %168 = vmatpush1.msra.mxu0 0.0
    %169 = vmatprep.subr.mxu0 0.0
    %170 = vmatpush1.msra.mxu0 0.0
    %171 = vmatprep.subr.mxu0 0.0
    %172 = vmatpush1.msra.mxu0 0.0
    %173 = vmatprep.subr.mxu0 0.0
    %174 = vmatpush1.msra.mxu0 0.0
    %175 = vmatprep.subr.mxu0 0.0
    %176 = vmatpush1.msra.mxu0 0.0
    %177 = vmatprep.subr.mxu0 0.0
    %178 = vmatpush1.msra.mxu0 0.0
    %179 = vmatprep.subr.mxu0 0.0
    %180 = vmatpush1.msra.mxu0 0.0
    %181 = vmatprep.subr.mxu0 0.0
    %182 = vmatpush1.msra.mxu0 0.0
    %183 = vmatprep.subr.mxu0 0.0
    %184 = vmatpush1.msra.mxu0 0.0
    %185 = vmatprep.subr.mxu0 0.0
    %186 = vmatpush1.msra.mxu0 0.0
    %187 = vmatprep.subr.mxu0 0.0
    %188 = vmatpush1.msra.mxu0 0.0
    %189 = vmatprep.subr.mxu0 0.0
    %190 = vmatpush1.msra.mxu0 0.0
    %191 = vmatprep.subr.mxu0 0.0
    %192 = vmatpush1.msra.mxu0 0.0
    %193 = vmatprep.subr.mxu0 0.0
    %194 = vmatpush1.msra.mxu0 0.0
    %195 = vmatprep.subr.mxu0 0.0
    %196 = vmatpush1.msra.mxu0 0.0
    %197 = vmatprep.subr.mxu0 0.0
    %198 = vmatpush1.msra.mxu0 0.0
    %199 = vmatprep.subr.mxu0 0.0
    %200 = vmatpush1.msra.mxu0 0.0
    %201 = vmatprep.subr.mxu0 0.0
    %202 = vmatpush1.msra.mxu0 0.0
    %203 = vmatprep.subr.mxu0 0.0
    %204 = vmatpush1.msra.mxu0 0.0
    %205 = vmatprep.subr.mxu0 0.0
    %206 = vmatpush1.msra.mxu0 0.0
    %207 = vmatprep.mubr.f32.mxu0 0.0
    %208 = vmatmul.mubr.f32.gmra.mrb[0].mxu0 %v138
    %v209 = vpop.f32.mrb[0].mxu0
    %v210 = vadd.f32 0.0, %v209
    %v211 = vpop.f32.mrb[0].mxu0
    %212 = vmatprep.mubr.f32.mxu0 0.0
    %213 = vmatmul.mubr.f32.gmra.mrb[0].mxu0 %v141
    %v214 = vpop.f32.mrb[0].mxu0
    %v215 = vadd.f32 0.0, %v214
    %v216 = vpop.f32.mrb[0].mxu0
    %217 = vdwg.mxu0
    %v218 = vld [vmem:[%s4] sm:$0xff]
    %v219 = vlaneseq
    %v220 = vand.u32 %v219, 127
    %221 = vset.pattern.permute.xlu0 1
    %222 = vperm.xlu0 %221, %v218
    %v223 = vpop.permute.xlu0 %222
    %vm224 = vcmp.eq.s32.totalorder %v220, %v223
    %v225 = vsel %vm224, 1, 0
    %v226 = vcvt.s32.f32 %v225
    %227 = vset.pattern.permute.xlu0 0
    %228 = vperm.xlu0 %227, %v218
    %v229 = vpop.permute.xlu0 %228
    %vm230 = vcmp.eq.s32.totalorder %v220, %v229
    %v231 = vsel %vm230, 1, 0
    %v232 = vcvt.s32.f32 %v231
    %v233 = vmul.f32 %v210, %v226
    %v234 = vmul.f32 %v215, %v232
    %v235 = vsub.f32 %v233, %v234
    %vm236 = vcmask 130048
    %v237 = vsel %vm236, %v235, 0.0
    %238 = vadd.xlane.f32.xlu0 %v237
    %v239 = vpop.xlane.xlu0 %238
    %v240 = vadd.f32 %v239, 1.0
    %v241 = vmax.f32 %v240, 0.0
    %vm242 = vcmask 7168
    %v243 = vsel %vm242, %v241, 0.0
    %244 = vadd.xlane.f32.xlu0 %v243
    %v245 = vpop.xlane.xlu0 %244
    %v246 = vrot.slane %v245, 4
    %v247 = vadd.f32 %v245, %v246
    %v248 = vrot.slane %v247, 2
    %v249 = vadd.f32 %v247, %v248
    %v250 = vrot.slane %v249, 1
    %v251 = vadd.f32 %v249, %v250
    %s252 = vtos %v251
    %s253 = smul.f32 %s252, 0.125
    %s254 = scalar_lea.smem [#allocation2], 0
    %255 = sst [smem:[%s254]] %s253
    // Predicated region
    $region22: #{tpu_custom_call.1} parent=1 // pred_check
      _
    $region23: #{tpu_custom_call.1} parent=1 // pred_check_branch
      %257 = sbr.rel (0) target = $region25
    $region24: #{tpu_custom_call.1} parent=1 // pred_region
      %s259 = ssub.s32 16, 16
      %260 = vsyncadd [#allocation3], %s259
      %263 = dma.smem_to_hbm [#allocation2], 16, %s5, [#allocation3]
    $region25: #{tpu_custom_call.1} parent=1 // pred_fallthru
      _
    // Predicated region
    $region26: #{tpu_custom_call.1} parent=1 // pred_check
      _
    $region27: #{tpu_custom_call.1} parent=1 // pred_check_branch
      %265 = sbr.rel (0) target = $region29
    $region28: #{tpu_custom_call.1} parent=1 // pred_region
      %266 = dma.done [#allocation3], 16
    $region29: #{tpu_custom_call.1} parent=1 // pred_fallthru
      _
    %267 = sfence
    %268 = vsyncpa [#allocation3], 1

</llo_original>
